<compile_context>
chip_gen: v5e
topology: v5e:2x2
jax: 0.10.0
libtpu: 0.0.40
codegen_flags: <defaults>
</compile_context>

<pallas_src>
import jax
import jax.numpy as jnp
from jax import lax
from jax.experimental import pallas as pl
from jax.experimental.pallas import tpu as pltpu

_LANES = 128
_SUBLANES = 8
_TARGET_BLOCK_BYTES = 4 << 20      # per-input VMEM buffer target (~4 MiB)
_VMEM_LIMIT_BYTES = 40 << 20       # fits v5e/v6e (128 MiB) and v7x (64 MiB)
_SPLIT_MIN_BLOCKS = 8              # only megacore-split when there is real work


def _cdiv(a: int, b: int) -> int:
    return -(-a // b)


def _round_up(x: int, m: int) -> int:
    return ((x + m - 1) // m) * m


def _row_align(dtype) -> int:
    """Min sublane-aligned row multiple for a dtype (8 f32 / 16 bf16 / 32 i8)."""
    itemsize = jnp.dtype(dtype).itemsize
    return max(_SUBLANES, 32 // max(1, min(4, itemsize)))


def _num_tensorcores() -> int:
    """Best-effort TensorCores-per-chip (2 on v7x, 1 on v5e/v6e); safe default 1."""
    try:
        info = pltpu.get_tpu_info()
        for attr in ("num_cores", "num_tensorcores", "tensorcores_per_chip",
                     "cores_per_chip", "core_count"):
            v = getattr(info, attr, None)
            if v:
                return max(1, int(v))
    except Exception:
        pass
    try:
        dev = jax.devices()[0]
        for attr in ("num_cores", "core_count"):
            v = getattr(dev, attr, None)
            if v:
                return max(1, int(v))
    except Exception:
        pass
    return 1


_NUM_CORES = _num_tensorcores()


def _pick_num_strips(block_rows: int) -> int:
    """Largest strip count (<=16) whose strips stay a multiple of 8 rows."""
    for ns in (16, 8, 4, 2):
        if block_rows % (ns * _SUBLANES) == 0:
            return ns
    return 1


def _make_kernel(*, block_rows, rows_total, num_row_blocks, blocks_per_split,
                 num_strips, need_mask):
    strip_rows = block_rows // num_strips

    def _accumulate(y_ref, t_ref, acc_ref, block_row0, masked):
        def step(s, carry):
            r0 = pl.multiple_of(s * strip_rows, strip_rows)
            d = jnp.abs(y_ref[pl.ds(r0, strip_rows), :].astype(jnp.float32)
                        - t_ref[pl.ds(r0, strip_rows), :].astype(jnp.float32))
            if masked:
                # (strip_rows, 1) sublane iota vs scalar, broadcast over lanes.
                # Select (not multiply) so garbage in the undefined region of a
                # partial edge-block DMA (even NaN/Inf) contributes exactly 0.
                row_ids = (block_row0 + r0
                           + lax.broadcasted_iota(jnp.int32, (strip_rows, 1), 0))
                d = jnp.where(row_ids < rows_total, d, 0.0)
            # Lane-dense partial sums: pure VPU adds into the (8,128) output
            # block; the single cross-lane reduce happens once, in JAX.
            acc_ref[...] += d.reshape(strip_rows // _SUBLANES, _SUBLANES,
                                      _LANES).sum(axis=0)
            return carry

        lax.fori_loop(0, num_strips, step, 0, unroll=True)

    def kernel(y_ref, t_ref, acc_ref):
        c = pl.program_id(0)    # megacore split axis ("parallel")
        i = pl.program_id(1)    # reduction axis      ("arbitrary")

        @pl.when(i == 0)
        def _():
            acc_ref[...] = jnp.zeros_like(acc_ref)

        logical_block = c * blocks_per_split + i
        block_row0 = logical_block * block_rows

        if need_mask:
            is_last = logical_block == num_row_blocks - 1

            @pl.when(is_last)
            def _():
                _accumulate(y_ref, t_ref, acc_ref, block_row0, True)

            @pl.when(jnp.logical_not(is_last))
            def _():
                _accumulate(y_ref, t_ref, acc_ref, block_row0, False)
        else:
            _accumulate(y_ref, t_ref, acc_ref, block_row0, False)

    return kernel


def _abs_diff_sum(y, t, *, block_rows_override=None, num_splits_override=None):
    """sum(|y - t|) in f32 via a Pallas TPU streaming-reduction kernel."""
    assert y.shape == t.shape, (y.shape, t.shape)
    n = int(y.size)
    if n == 0:
        return jnp.float32(0.0)

    y_flat = jnp.ravel(y)
    t_flat = jnp.ravel(t)

    row_align = max(_row_align(y.dtype), _row_align(t.dtype))
    chunk = row_align * _LANES

    main = (n // chunk) * chunk
    tail = n - main

    tail_sum = jnp.float32(0.0)
    if tail:
        # <= chunk-1 elements: tiny plain-JAX reduction.  (Only this rare
        # ragged case pays one prefix-relayout pass; it replaces the old
        # full-array jnp.pad copy.)
        tail_sum = jnp.sum(jnp.abs(y_flat[main:].astype(jnp.float32)
                                   - t_flat[main:].astype(jnp.float32)))
        if main == 0:
            return tail_sum
        y_flat = y_flat[:main]
        t_flat = t_flat[:main]

    rows = main // _LANES                      # multiple of row_align (>= 8)
    y2 = y_flat.reshape(rows, _LANES)          # zero-copy lane-dense view
    t2 = t_flat.reshape(rows, _LANES)

    itemsize = max(jnp.dtype(y.dtype).itemsize, jnp.dtype(t.dtype).itemsize)
    max_block_rows = max(row_align,
                         (_TARGET_BLOCK_BYTES // (_LANES * itemsize))
                         // row_align * row_align)

    if block_rows_override is not None:
        block_rows = min(rows, int(block_rows_override))
        assert block_rows == rows or block_rows % row_align == 0
    else:
        block_rows = min(rows, max_block_rows)
    num_row_blocks = _cdiv(rows, block_rows)

    # --- megacore split (v7x only): require an even block count so there is
    # --- never a clamped / fully-masked wasted block DMA.
    if num_splits_override is not None:
        num_splits = int(num_splits_override)
        assert num_row_blocks % num_splits == 0
    else:
        num_splits = 1
        if (_NUM_CORES >= 2 and num_row_blocks >= _SPLIT_MIN_BLOCKS
                and block_rows_override is None):
            if num_row_blocks % 2 != 0:
                # Shrink the block slightly so the count becomes even.
                new_block = _round_up(_cdiv(rows, num_row_blocks + 1), row_align)
                new_nblocks = _cdiv(rows, new_block)
                if new_nblocks % 2 == 0:
                    block_rows, num_row_blocks = new_block, new_nblocks
            if num_row_blocks % 2 == 0:
                num_splits = 2

    blocks_per_split = num_row_blocks // num_splits
    need_mask = num_row_blocks * block_rows != rows
    num_strips = _pick_num_strips(block_rows)

    kernel = _make_kernel(block_rows=block_rows, rows_total=rows,
                          num_row_blocks=num_row_blocks,
                          blocks_per_split=blocks_per_split,
                          num_strips=num_strips, need_mask=need_mask)

    def in_index_map(c, i):
        return (c * blocks_per_split + i, 0)

    bytes_accessed = (main * (jnp.dtype(y.dtype).itemsize
                              + jnp.dtype(t.dtype).itemsize)
                      + num_splits * _SUBLANES * _LANES * 4)

    partials = pl.pallas_call(
        kernel,
        out_shape=jax.ShapeDtypeStruct((num_splits, _SUBLANES, _LANES),
                                       jnp.float32),
        grid_spec=pltpu.PrefetchScalarGridSpec(
            num_scalar_prefetch=0,
            grid=(num_splits, blocks_per_split),
            in_specs=[
                pl.BlockSpec((block_rows, _LANES), in_index_map),
                pl.BlockSpec((block_rows, _LANES), in_index_map),
            ],
            out_specs=pl.BlockSpec((None, _SUBLANES, _LANES),
                                   lambda c, i: (c, 0, 0)),
        ),
        compiler_params=pltpu.CompilerParams(
            dimension_semantics=("parallel", "arbitrary"),
            vmem_limit_bytes=_VMEM_LIMIT_BYTES,
        ),
        cost_estimate=pl.CostEstimate(
            flops=3 * main, transcendentals=0, bytes_accessed=bytes_accessed),
    )(y2, t2)

    # Tiny final cross-lane reduce (<= 2 * 8 * 128 elements), once, in JAX.
    return jnp.sum(partials) + tail_sum


def rec_loss(y_list, t_list, weight=1.0):
    """JAX/Pallas equivalent of RecLoss.forward."""
    y = y_list[-1]
    t = t_list[-1]
    batch = y.shape[0]
    total = _abs_diff_sum(y, t)
    return (weight * total / batch).astype(jnp.float32)


if __name__ == "__main__":
    key = jax.random.PRNGKey(0)
    k1, k2, k3, k4 = jax.random.split(key, 4)

    # Small NCHW shapes; multiple entries per list (only the last is used).
    y_list = [
        jax.random.normal(k1, (2, 4, 8, 8), dtype=jnp.float32),
        jax.random.normal(k2, (2, 4, 16, 16), dtype=jnp.float32),
    ]
    t_list = [
        jax.random.normal(k3, (2, 4, 8, 8), dtype=jnp.float32),
        jax.random.normal(k4, (2, 4, 16, 16), dtype=jnp.float32),
    ]

    weight = 1.0
    loss = jax.block_until_ready(rec_loss(y_list, t_list, weight=weight))
    ref = weight * jnp.sum(jnp.abs(y_list[-1] - t_list[-1])) / y_list[-1].shape[0]
    assert jnp.allclose(loss, ref, rtol=1e-5, atol=1e-5), (loss, ref)

    # Extra coverage: ragged-tail path, ragged last block (masked path), and
    # split-axis index arithmetic (forced small blocks on small data).
    k5, k6 = jax.random.split(k4)
    ya = jax.random.normal(k5, (2, 3, 17, 19), dtype=jnp.float32)   # ragged n
    ta = jax.random.normal(k6, (2, 3, 17, 19), dtype=jnp.float32)
    got_a = jax.block_until_ready(_abs_diff_sum(ya, ta))
    want_a = jnp.sum(jnp.abs(ya - ta))
    assert jnp.allclose(got_a, want_a, rtol=1e-5, atol=1e-4), (got_a, want_a)

    yb = jax.random.normal(k5, (4, 4, 16, 18), dtype=jnp.float32)   # rows=32 + tail
    tb = jax.random.normal(k6, (4, 4, 16, 18), dtype=jnp.float32)
    want_b = jnp.sum(jnp.abs(yb - tb))
    got_masked = jax.block_until_ready(
        _abs_diff_sum(yb, tb, block_rows_override=24))               # partial last block
    got_split = jax.block_until_ready(
        _abs_diff_sum(yb, tb, block_rows_override=8, num_splits_override=2))
    assert jnp.allclose(got_masked, want_b, rtol=1e-5, atol=1e-4), (got_masked, want_b)
    assert jnp.allclose(got_split, want_b, rtol=1e-5, atol=1e-4), (got_split, want_b)

    print("KERNEL_OK")
</pallas_src>

<mosaic_0001>
module attributes {stable_mosaic.version = 11 : i64} {
  func.func @kernel(%arg0: i32, %arg1: i32, %arg2: memref<16x128xf32, #tpu.memory_space<vmem>>, %arg3: memref<16x128xf32, #tpu.memory_space<vmem>>, %arg4: memref<1x8x128xf32, #tpu.memory_space<vmem>>) attributes {dimension_semantics = [#tpu.dimension_semantics<parallel>, #tpu.dimension_semantics<arbitrary>], iteration_bounds = array<i64: 1, 1>, scalar_prefetch = 0 : i64, scratch_operands = 0 : i64, tpu.core_type = #tpu.core_type<tc>, window_params = [{transform_indices = @transform_0, window_bounds = array<i64: 16, 128>}, {transform_indices = @transform_1, window_bounds = array<i64: 16, 128>}, {transform_indices = @transform_2, window_bounds = array<i64: 1, 8, 128>}]} {
    %c0_i32 = arith.constant 0 : i32
    %0 = arith.cmpi eq, %arg1, %c0_i32 : i32
    %1 = arith.extui %0 : i1 to i32
    %c0_i32_0 = arith.constant 0 : i32
    %2 = arith.cmpi ne, %1, %c0_i32_0 : i32
    scf.if %2 {
      %cst_19 = arith.constant 0.000000e+00 : f32
      %35 = vector.broadcast %cst_19 : f32 to vector<8x128xf32>
      %c0_20 = arith.constant 0 : index
      %c0_21 = arith.constant 0 : index
      %c0_22 = arith.constant 0 : index
      %36 = vector.load %arg4[%c0_20, %c0_21, %c0_22] : memref<1x8x128xf32, #tpu.memory_space<vmem>>, vector<1x8x128xf32>
      %37 = vector.shape_cast %36 : vector<1x8x128xf32> to vector<8x128xf32>
      %38 = vector.shape_cast %35 : vector<8x128xf32> to vector<1x8x128xf32>
      tpu.vector_store %arg4[%c0_20, %c0_21, %c0_22], %38 {strides = array<i32>} : memref<1x8x128xf32, #tpu.memory_space<vmem>>, vector<1x8x128xf32>,
    } else {
    }
    %c0_i32_1 = arith.constant 0 : i32
    %c8_i32 = arith.constant 8 : i32
    %3 = arith.muli %c0_i32_1, %c8_i32 : i32
    %4 = tpu.assume_multiple %3, 8 : i32
    %5 = arith.index_cast %4 : i32 to index
    %c0 = arith.constant 0 : index
    %6 = vector.load %arg2[%5, %c0] : memref<16x128xf32, #tpu.memory_space<vmem>>, vector<8x128xf32>
    %7 = arith.index_cast %4 : i32 to index
    %c0_2 = arith.constant 0 : index
    %8 = vector.load %arg3[%7, %c0_2] : memref<16x128xf32, #tpu.memory_space<vmem>>, vector<8x128xf32>
    %9 = arith.subf %6, %8 : vector<8x128xf32>
    %10 = math.absf %9 : vector<8x128xf32>
    %c0_3 = arith.constant 0 : index
    %c0_4 = arith.constant 0 : index
    %c0_5 = arith.constant 0 : index
    %11 = vector.load %arg4[%c0_3, %c0_4, %c0_5] : memref<1x8x128xf32, #tpu.memory_space<vmem>>, vector<1x8x128xf32>
    %12 = vector.shape_cast %11 : vector<1x8x128xf32> to vector<8x128xf32>
    %13 = vector.shape_cast %10 : vector<8x128xf32> to vector<1x8x128xf32>
    %cst = arith.constant dense<0.000000e+00> : vector<8x128xf32>
    %14 = vector.multi_reduction <add>, %13, %cst [0] : vector<1x8x128xf32> to vector<8x128xf32>
    %15 = arith.addf %12, %14 : vector<8x128xf32>
    %c0_6 = arith.constant 0 : index
    %c0_7 = arith.constant 0 : index
    %c0_8 = arith.constant 0 : index
    %16 = vector.load %arg4[%c0_6, %c0_7, %c0_8] : memref<1x8x128xf32, #tpu.memory_space<vmem>>, vector<1x8x128xf32>
    %17 = vector.shape_cast %16 : vector<1x8x128xf32> to vector<8x128xf32>
    %18 = vector.shape_cast %15 : vector<8x128xf32> to vector<1x8x128xf32>
    tpu.vector_store %arg4[%c0_6, %c0_7, %c0_8], %18 {strides = array<i32>} : memref<1x8x128xf32, #tpu.memory_space<vmem>>, vector<1x8x128xf32>,
    %c1_i32 = arith.constant 1 : i32
    %c8_i32_9 = arith.constant 8 : i32
    %19 = arith.muli %c1_i32, %c8_i32_9 : i32
    %20 = tpu.assume_multiple %19, 8 : i32
    %21 = arith.index_cast %20 : i32 to index
    %c0_10 = arith.constant 0 : index
    %22 = vector.load %arg2[%21, %c0_10] : memref<16x128xf32, #tpu.memory_space<vmem>>, vector<8x128xf32>
    %23 = arith.index_cast %20 : i32 to index
    %c0_11 = arith.constant 0 : index
    %24 = vector.load %arg3[%23, %c0_11] : memref<16x128xf32, #tpu.memory_space<vmem>>, vector<8x128xf32>
    %25 = arith.subf %22, %24 : vector<8x128xf32>
    %26 = math.absf %25 : vector<8x128xf32>
    %c0_12 = arith.constant 0 : index
    %c0_13 = arith.constant 0 : index
    %c0_14 = arith.constant 0 : index
    %27 = vector.load %arg4[%c0_12, %c0_13, %c0_14] : memref<1x8x128xf32, #tpu.memory_space<vmem>>, vector<1x8x128xf32>
    %28 = vector.shape_cast %27 : vector<1x8x128xf32> to vector<8x128xf32>
    %29 = vector.shape_cast %26 : vector<8x128xf32> to vector<1x8x128xf32>
    %cst_15 = arith.constant dense<0.000000e+00> : vector<8x128xf32>
    %30 = vector.multi_reduction <add>, %29, %cst_15 [0] : vector<1x8x128xf32> to vector<8x128xf32>
    %31 = arith.addf %28, %30 : vector<8x128xf32>
    %c0_16 = arith.constant 0 : index
    %c0_17 = arith.constant 0 : index
    %c0_18 = arith.constant 0 : index
    %32 = vector.load %arg4[%c0_16, %c0_17, %c0_18] : memref<1x8x128xf32, #tpu.memory_space<vmem>>, vector<1x8x128xf32>
    %33 = vector.shape_cast %32 : vector<1x8x128xf32> to vector<8x128xf32>
    %34 = vector.shape_cast %31 : vector<8x128xf32> to vector<1x8x128xf32>
    tpu.vector_store %arg4[%c0_16, %c0_17, %c0_18], %34 {strides = array<i32>} : memref<1x8x128xf32, #tpu.memory_space<vmem>>, vector<1x8x128xf32>,
    %c2_i32 = arith.constant 2 : i32
    return
  }
  func.func @transform_0(%arg0: i32, %arg1: i32) -> (i32, i32) {
    %c1_i32 = arith.constant 1 : i32
    %0 = arith.muli %arg0, %c1_i32 : i32
    %1 = arith.addi %0, %arg1 : i32
    %c0_i32 = arith.constant 0 : i32
    %c0_i32_0 = arith.constant 0 : i32
    return %1, %c0_i32 : i32, i32
  }
  func.func @transform_1(%arg0: i32, %arg1: i32) -> (i32, i32) {
    %c1_i32 = arith.constant 1 : i32
    %0 = arith.muli %arg0, %c1_i32 : i32
    %1 = arith.addi %0, %arg1 : i32
    %c0_i32 = arith.constant 0 : i32
    %c0_i32_0 = arith.constant 0 : i32
    return %1, %c0_i32 : i32, i32
  }
  func.func @transform_2(%arg0: i32, %arg1: i32) -> (i32, i32, i32) {
    %c0_i32 = arith.constant 0 : i32
    %c0_i32_0 = arith.constant 0 : i32
    %c0_i32_1 = arith.constant 0 : i32
    return %arg0, %c0_i32, %c0_i32_0 : i32, i32, i32
  }
}

</mosaic_0001>

<llo_original>
// kernel: tpu_custom_call.1
$region0: #{tpu_custom_call.1}
  #allocation0 [shape = 'u32[]', space=smem, size = 0x4, offset = 0x4, fixed_abs, tag = 'smem constant byte address 0x4 - core index']
  #allocation1 [shape = 'u32[72,128]{1,0:T(1,128)}', space=vmem, size = 0x9000, scoped, tag = 'internal scratch']
  %s0 = inlined_call_operand.hbm [shape: f32[16,128], index: 0, kind: input, shape index: {}]
  %s1 = inlined_call_operand.hbm [shape: f32[16,128], index: 1, kind: input, shape index: {}]
  %s2 = inlined_call_operand.hbm [shape: f32[1,8,128], index: 2, kind: output, shape index: {}]
  %s3 = sld [smem:[#allocation0]]
  $region30: #{tpu_custom_call.1} parent=0
    _
  %s5 = ssub.s32 1, %s3
  %s6 = scalar_select 0, %s5, %s3
  $region1: #{tpu_custom_call.1} parent=0
    #allocation2 [shape = 'u8[8192]{0}', space=vmem, size = 0x2000, scoped, tag = 'input window, operand 0, single buffered']
    #allocation3 [shape = 's32[1]{0}', space=sflag, size = 0x4, scoped, tag = 'scoped memory for tpu_custom_call.1']
    #allocation4 [shape = 's32[1]{0}', space=sflag, size = 0x4, scoped, tag = 'scoped memory for tpu_custom_call.1']
    #allocation5 [shape = 'u8[8192]{0}', space=vmem, size = 0x2000, scoped, tag = 'input window, operand 1, single buffered']
    #allocation6 [shape = 's32[1]{0}', space=sflag, size = 0x4, scoped, tag = 'scoped memory for tpu_custom_call.1']
    #allocation7 [shape = 'u8[4096]{0}', space=vmem, size = 0x1000, scoped, tag = 'output window, operand 0, single buffered']
    %7 = vsyncpa [#allocation3], 0
    %8 = vsyncpa [#allocation6], 0
    %9 = vsyncpa [#allocation4], 0
    // Predicated region
    $region2: #{tpu_custom_call.1} parent=1 // pred_check
      _
    $region3: #{tpu_custom_call.1} parent=1 // pred_check_branch
      %11 = sbr.rel (0) target = $region5
    $region4: #{tpu_custom_call.1} parent=1 // pred_region
      %s12 = sadd.s32 0, 0
      %s13 = smul.u32 2, %s12
      %15 = vsyncadd [#allocation3], 0
      %s16 = smul.addr %s13, 8
      %s17 = scalar_lea.hbm %s0, %s16
      %s18 = sshll.u32 %s17, 4
      %s19 = int_to_ptr.hbm [resolvable:$true] %s18
      %s20 = sshll.u32 [#allocation2], 4
      %s21 = int_to_ptr.vmem [resolvable:$true] %s20
      %26 = dma.hbm_to_vmem [thread:$0]  %s19, 256, %s21, [#allocation3], 128, 128, 8
    $region5: #{tpu_custom_call.1} parent=1 // pred_fallthru
      _
    // Predicated region
    $region6: #{tpu_custom_call.1} parent=1 // pred_check
      _
    $region7: #{tpu_custom_call.1} parent=1 // pred_check_branch
      %28 = sbr.rel (0) target = $region9
    $region8: #{tpu_custom_call.1} parent=1 // pred_region
      %s29 = sadd.s32 0, 0
      %s30 = smul.u32 2, %s29
      %32 = vsyncadd [#allocation6], 0
      %s33 = smul.addr %s30, 8
      %s34 = scalar_lea.hbm %s1, %s33
      %s35 = sshll.u32 %s34, 4
      %s36 = int_to_ptr.hbm [resolvable:$true] %s35
      %s37 = sshll.u32 [#allocation5], 4
      %s38 = int_to_ptr.vmem [resolvable:$true] %s37
      %43 = dma.hbm_to_vmem [thread:$0]  %s36, 256, %s38, [#allocation6], 128, 128, 8
    $region9: #{tpu_custom_call.1} parent=1 // pred_fallthru
      _
    // Predicated region
    $region10: #{tpu_custom_call.1} parent=1 // pred_check
      _
    $region11: #{tpu_custom_call.1} parent=1 // pred_check_branch
      %45 = sbr.rel (0) target = $region13
    $region12: #{tpu_custom_call.1} parent=1 // pred_region
      %47 = dma.done [#allocation3], 256
    $region13: #{tpu_custom_call.1} parent=1 // pred_fallthru
      _
    // Predicated region
    $region14: #{tpu_custom_call.1} parent=1 // pred_check
      _
    $region15: #{tpu_custom_call.1} parent=1 // pred_check_branch
      %49 = sbr.rel (0) target = $region17
    $region16: #{tpu_custom_call.1} parent=1 // pred_region
      %51 = dma.done [#allocation6], 256
    $region17: #{tpu_custom_call.1} parent=1 // pred_fallthru
      _
    %s52 = sadd.s32 0, 0
    %s53 = smul.u32 2, %s52
    %s54 = sadd.s32 0, 0
    %s55 = smul.u32 2, %s54
    %p56 = scmp.eq.s32.totalorder 0, 0
    // Predicated region
    $region18: #{tpu_custom_call.1} parent=1 // pred_check
      %p57 = pneg %p56
    $region19: #{tpu_custom_call.1} parent=1 // pred_check_branch
      %59 = sbr.rel (%p57) target = $region21
    $region20: #{tpu_custom_call.1} parent=1 // pred_region
      %60 = vst [vmem:[#allocation7] sm:$0xff] 0.0
    $region21: #{tpu_custom_call.1} parent=1 // pred_fallthru
      _
    %v61 = vld [vmem:[#allocation2] sm:$0xff]
    %v62 = vld [vmem:[#allocation5] sm:$0xff]
    %v63 = vsub.f32 %v61, %v62
    %v64 = vand.u32 2147483647, %v63
    %v65 = vld [vmem:[#allocation7] sm:$0xff]
    %v66 = vadd.f32 %v64, 0.0
    %v67 = vadd.f32 %v65, %v66
    %68 = vst [vmem:[#allocation7] sm:$0xff] %v67
    %s69 = scalar_lea.vmem [#allocation2], 8
    %v70 = vld [vmem:[%s69] sm:$0xff]
    %s71 = scalar_lea.vmem [#allocation5], 8
    %v72 = vld [vmem:[%s71] sm:$0xff]
    %v73 = vsub.f32 %v70, %v72
    %v74 = vand.u32 2147483647, %v73
    %v75 = vld [vmem:[#allocation7] sm:$0xff]
    %v76 = vadd.f32 %v74, 0.0
    %v77 = vadd.f32 %v75, %v76
    %78 = vst [vmem:[#allocation7] sm:$0xff] %v77
    // Predicated region
    $region22: #{tpu_custom_call.1} parent=1 // pred_check
      _
    $region23: #{tpu_custom_call.1} parent=1 // pred_check_branch
      %80 = sbr.rel (0) target = $region25
    $region24: #{tpu_custom_call.1} parent=1 // pred_region
      %82 = vsyncadd [#allocation4], 0
      %s84 = sshll.u32 [#allocation7], 4
      %s85 = int_to_ptr.vmem [resolvable:$true] %s84
      %s86 = sshll.u32 %s2, 4
      %s87 = int_to_ptr.hbm [resolvable:$true] %s86
      %89 = dma.vmem_to_hbm [thread:$0]  %s85, 128, %s87, [#allocation4]
    $region25: #{tpu_custom_call.1} parent=1 // pred_fallthru
      _
    // Predicated region
    $region26: #{tpu_custom_call.1} parent=1 // pred_check
      _
    $region27: #{tpu_custom_call.1} parent=1 // pred_check_branch
      %91 = sbr.rel (0) target = $region29
    $region28: #{tpu_custom_call.1} parent=1 // pred_region
      %93 = dma.done [#allocation4], 128
    $region29: #{tpu_custom_call.1} parent=1 // pred_fallthru
      _
    %94 = vsyncpa [#allocation3], 1
    %95 = vsyncpa [#allocation6], 1
    %96 = vsyncpa [#allocation4], 1

</llo_original>
